<compile_context>
chip_gen: v6e
topology: v6e:2x2x1
jax: 0.10.0
libtpu: 0.0.40
codegen_flags: <defaults>
</compile_context>

<pallas_src>
import functools

import jax
import jax.numpy as jnp
from jax import lax
from jax.experimental import pallas as pl
from jax.experimental.pallas import tpu as pltpu

_LANES = 128


def _round_up(n, m):
    return ((n + m - 1) // m) * m


def _cdiv(a, b):
    return -(-a // b)


def _discrim_kernel(x_ref, w_in_ref, b_in_ref, w_h_ref, b_h_ref,
                    w_out_ref, b_out_ref, o_ref, *, n_layers):
    cd = w_in_ref.dtype  # MXU compute dtype (bf16 default); accumulation is f32.

    # input_block: Linear -> (Dropout = identity, eval mode) -> ReLU
    h = jnp.dot(x_ref[...].astype(cd), w_in_ref[...],
                preferred_element_type=jnp.float32)
    h = jnp.maximum(h + b_in_ref[...], 0.0)

    # blocks: n_layers x (Linear -> Dropout(identity) -> ReLU)
    if n_layers <= 4:
        # Small depth: static unroll (n_layers is compile-time).
        for i in range(n_layers):
            h = jnp.dot(h.astype(cd), w_h_ref[i],
                        preferred_element_type=jnp.float32)
            h = jnp.maximum(h + b_h_ref[i], 0.0)
    else:
        # Deep discriminators: bound code size / live ranges with fori_loop.
        def body(i, hc):
            hn = jnp.dot(hc.astype(cd), w_h_ref[i],
                         preferred_element_type=jnp.float32)
            return jnp.maximum(hn + b_h_ref[i], 0.0)
        h = lax.fori_loop(0, n_layers, body, h)

    # output_block: Linear(hidden, 1) -> Sigmoid.
    # N=1 matmul replaced by VPU multiply + lane reduction (frees the MXU);
    # padded hidden columns of w_out are zero so the reduction is exact.
    logits = jnp.sum(h * w_out_ref[...], axis=-1, keepdims=True)   # (tb, 1) f32
    logits = logits + b_out_ref[0, 0]                              # SMEM scalar
    o_ref[...] = jax.nn.sigmoid(logits).astype(o_ref.dtype)


def _choose_batch_tile(B, d_in, hidden_p, n_layers, w_itemsize, vmem_budget):
    """Pick (tb, b_pad, vmem_footprint) from a VMEM budget + cost model."""
    b128 = _round_up(max(B, 1), _LANES)
    n_chunks = b128 // _LANES

    # Resident weight/bias footprint (single-buffered, lane-padded hidden).
    weight_bytes = ((d_in * hidden_p + n_layers * hidden_p * hidden_p) * w_itemsize
                    + (2 + n_layers) * hidden_p * 4 + 4)
    # Per batch-row VMEM: double-buffered x tile (assume f32), double-buffered
    # (tb, 1) output, ~3 f32 hidden-width activations of working set.
    per_row = 2 * d_in * 4 + 2 * 4 + 3 * hidden_p * 4

    avail = vmem_budget - weight_bytes - (2 << 20)          # 2 MiB slack
    max_chunks = int(max(1, min(avail // (per_row * _LANES),
                                8192 // _LANES, n_chunks)))

    # Cost model: per-grid-step overhead (~0.35 us ~= 350 KB of HBM time at
    # ~1 TB/s) vs. padded-row DMA/compute waste (x stream dominates).
    step_bytes = 350_000
    row_bytes = d_in * 4 + 4
    best_c, best_cost = 1, None
    for c in range(1, max_chunks + 1):
        n_tiles = _cdiv(n_chunks, c)
        if n_chunks >= 2 and n_tiles < 2:
            continue                    # keep >=2 tiles so v7x's 2 TCs both work
        cost = n_tiles * step_bytes + n_tiles * c * _LANES * row_bytes
        if best_cost is None or cost < best_cost:
            best_c, best_cost = c, cost

    tb = best_c * _LANES
    b_pad = _cdiv(n_chunks, best_c) * tb
    # Conservative footprint (assume weights end up double-buffered on the
    # fallback path) used only to size vmem_limit_bytes.
    footprint = 2 * weight_bytes + tb * per_row + (2 << 20)
    return tb, b_pad, footprint


def discrim_forward(x, params, *, compute_dtype=jnp.bfloat16,
                    vmem_budget_bytes=32 << 20, batch_tile=None):
    """x: (B, input_dim) -> (B, 1) float32."""
    w_in, b_in, w_h, b_h, w_out, b_out = params
    B, d_in = x.shape
    hidden = w_in.shape[1]
    n_layers = w_h.shape[0]
    assert n_layers >= 1

    hidden_p = _round_up(hidden, _LANES)
    ph = hidden_p - hidden
    w_itemsize = jnp.dtype(compute_dtype).itemsize

    if batch_tile is None:
        tb, b_pad, footprint = _choose_batch_tile(
            B, d_in, hidden_p, n_layers, w_itemsize, vmem_budget_bytes)
    else:
        tb = _round_up(batch_tile, _LANES)
        b_pad = _round_up(B, tb)
        footprint = vmem_budget_bytes
    n_tiles = b_pad // tb

    if b_pad != B:   # zero-pad batch; padded rows are sliced off below
        x = jnp.pad(x, ((0, b_pad - B), (0, 0)))

    # Zero-pad hidden to a lane-dense multiple of 128 (exact: padded columns get
    # bias 0 -> ReLU(0)=0; padded rows/cols contribute nothing downstream).
    w_in_c = jnp.pad(w_in, ((0, 0), (0, ph))).astype(compute_dtype)
    b_in_f = jnp.pad(b_in.reshape(1, hidden).astype(jnp.float32),
                     ((0, 0), (0, ph)))
    w_h_c = jnp.pad(w_h, ((0, 0), (0, ph), (0, ph))).astype(compute_dtype)
    b_h_f = jnp.pad(b_h.reshape(n_layers, 1, hidden).astype(jnp.float32),
                    ((0, 0), (0, 0), (0, ph)))
    w_out_row = jnp.pad(w_out.reshape(1, hidden).astype(jnp.float32),
                        ((0, 0), (0, ph)))
    b_out_s = b_out.reshape(1, 1).astype(jnp.float32)

    vmem_limit = int(min(max(footprint * 3 // 2, 16 << 20), 56 << 20))

    kernel = functools.partial(_discrim_kernel, n_layers=n_layers)

    def call(weight_bufs):
        def wspec(shape, index_map):
            # Grid-invariant operands: single-buffer to halve resident VMEM.
            if weight_bufs == 1:
                return pl.BlockSpec(shape, index_map,
                                    pipeline_mode=pl.Buffered(1))
            return pl.BlockSpec(shape, index_map)

        return pl.pallas_call(
            kernel,
            out_shape=jax.ShapeDtypeStruct((b_pad, 1), jnp.float32),
            grid=(n_tiles,),
            in_specs=[
                pl.BlockSpec((tb, d_in), lambda i: (i, 0)),                 # x tile
                wspec((d_in, hidden_p), lambda i: (0, 0)),                  # w_in
                wspec((1, hidden_p), lambda i: (0, 0)),                     # b_in
                wspec((n_layers, hidden_p, hidden_p), lambda i: (0, 0, 0)), # w_h
                wspec((n_layers, 1, hidden_p), lambda i: (0, 0, 0)),        # b_h
                wspec((1, hidden_p), lambda i: (0, 0)),                     # w_out row
                pl.BlockSpec(memory_space=pltpu.MemorySpace.SMEM),          # b_out scalar
            ],
            out_specs=pl.BlockSpec((tb, 1), lambda i: (i, 0)),
            compiler_params=pltpu.CompilerParams(
                dimension_semantics=("parallel",),
                vmem_limit_bytes=vmem_limit),
        )(x, w_in_c, b_in_f, w_h_c, b_h_f, w_out_row, b_out_s)

    try:
        out = call(1)
    except Exception:   # pragma: no cover - jax without pipeline_mode support
        out = call(2)   # fall back to default double-buffering
    return out[:B]


def init_params(key, input_dim, hidden_dim, n_layers=1):
    """Deterministic synthetic init (shapes match the nn.Linear layers)."""
    k = jax.random.split(key, 6)
    w_in = jax.random.normal(k[0], (input_dim, hidden_dim), jnp.float32) * 0.1
    b_in = jax.random.normal(k[1], (1, hidden_dim), jnp.float32) * 0.1
    w_h = jax.random.normal(k[2], (n_layers, hidden_dim, hidden_dim),
                            jnp.float32) * 0.1
    b_h = jax.random.normal(k[3], (n_layers, 1, hidden_dim), jnp.float32) * 0.1
    w_out = jax.random.normal(k[4], (hidden_dim, 1), jnp.float32) * 0.1
    b_out = jax.random.normal(k[5], (1, 1), jnp.float32) * 0.1
    return (w_in, b_in, w_h, b_h, w_out, b_out)


def discrim_reference(x, params):
    """Pure-JAX f32 reference for correctness checking."""
    w_in, b_in, w_h, b_h, w_out, b_out = params
    h = jnp.maximum(x @ w_in + b_in, 0.0)
    for i in range(w_h.shape[0]):
        h = jnp.maximum(h @ w_h[i] + b_h[i], 0.0)
    return jax.nn.sigmoid(h @ w_out + b_out)


if __name__ == "__main__":
    key = jax.random.PRNGKey(0)
    kx, kp, kx2, kp2 = jax.random.split(key, 4)

    # Config 1: module defaults at small shapes.
    batch, input_dim, hidden_dim, n_layers = 8, 16, 32, 1
    x = jax.random.normal(kx, (batch, input_dim), jnp.float32)
    params = init_params(kp, input_dim, hidden_dim, n_layers)
    out = jax.block_until_ready(discrim_forward(x, params))
    ref = discrim_reference(x, params)
    assert out.shape == (batch, 1)
    assert jnp.allclose(out, ref, atol=1e-2, rtol=1e-2), (
        f"max abs err {jnp.max(jnp.abs(out - ref))}")

    # Config 2: exercises batch padding, lane-padded hidden and multiple layers.
    batch2, input_dim2, hidden_dim2, n_layers2 = 300, 16, 48, 2
    x2 = jax.random.normal(kx2, (batch2, input_dim2), jnp.float32)
    params2 = init_params(kp2, input_dim2, hidden_dim2, n_layers2)
    out2 = jax.block_until_ready(discrim_forward(x2, params2))
    ref2 = discrim_reference(x2, params2)
    assert out2.shape == (batch2, 1)
    assert jnp.allclose(out2, ref2, atol=1e-2, rtol=1e-2), (
        f"max abs err {jnp.max(jnp.abs(out2 - ref2))}")

    print("KERNEL_OK")
</pallas_src>

<mosaic_0001>
module attributes {stable_mosaic.version = 11 : i64} {
  func.func @_discrim_kernel(%arg0: i32, %arg1: memref<128x16xf32, #tpu.memory_space<vmem>>, %arg2: memref<16x128xbf16, #tpu.memory_space<vmem>>, %arg3: memref<1x128xf32, #tpu.memory_space<vmem>>, %arg4: memref<1x128x128xbf16, #tpu.memory_space<vmem>>, %arg5: memref<1x1x128xf32, #tpu.memory_space<vmem>>, %arg6: memref<1x128xf32, #tpu.memory_space<vmem>>, %arg7: memref<1x1xf32, #tpu.memory_space<smem>>, %arg8: memref<128x1xf32, #tpu.memory_space<vmem>>) attributes {dimension_semantics = [#tpu.dimension_semantics<parallel>], iteration_bounds = array<i64: 1>, scalar_prefetch = 0 : i64, scratch_operands = 0 : i64, tpu.core_type = #tpu.core_type<tc>, window_params = [{transform_indices = @transform_0, window_bounds = array<i64: 128, 16>}, {pipeline_mode = #tpu.pipeline_mode<synchronous>, transform_indices = @transform_1, window_bounds = array<i64: 16, 128>}, {pipeline_mode = #tpu.pipeline_mode<synchronous>, transform_indices = @transform_2, window_bounds = array<i64: 1, 128>}, {pipeline_mode = #tpu.pipeline_mode<synchronous>, transform_indices = @transform_3, window_bounds = array<i64: 1, 128, 128>}, {pipeline_mode = #tpu.pipeline_mode<synchronous>, transform_indices = @transform_4, window_bounds = array<i64: 1, 1, 128>}, {pipeline_mode = #tpu.pipeline_mode<synchronous>, transform_indices = @transform_5, window_bounds = array<i64: 1, 128>}, {transform_indices = @transform_6, window_bounds = array<i64: 1, 1>}, {transform_indices = @transform_7, window_bounds = array<i64: 128, 1>}]} {
    %c0 = arith.constant 0 : index
    %c0_0 = arith.constant 0 : index
    %0 = vector.load %arg1[%c0, %c0_0] : memref<128x16xf32, #tpu.memory_space<vmem>>, vector<128x16xf32>
    %1 = arith.truncf %0 : vector<128x16xf32> to vector<128x16xbf16>
    %c0_1 = arith.constant 0 : index
    %c0_2 = arith.constant 0 : index
    %2 = vector.load %arg2[%c0_1, %c0_2] : memref<16x128xbf16, #tpu.memory_space<vmem>>, vector<16x128xbf16>
    %cst = arith.constant dense<0.000000e+00> : vector<128x128xf32>
    %3 = tpu.matmul %1, %2, %cst {dimension_numbers = #tpu.dot_dimension_numbers<[1], [0], [0], [1], [0, 0, 1, 1], [], []>} : vector<128x16xbf16>, vector<16x128xbf16>, vector<128x128xf32> -> vector<128x128xf32>
    %c0_3 = arith.constant 0 : index
    %c0_4 = arith.constant 0 : index
    %4 = vector.load %arg3[%c0_3, %c0_4] : memref<1x128xf32, #tpu.memory_space<vmem>>, vector<1x128xf32>
    %5 = vector.broadcast %4 : vector<1x128xf32> to vector<128x128xf32>
    %6 = arith.addf %3, %5 : vector<128x128xf32>
    %cst_5 = arith.constant 0.000000e+00 : f32
    %7 = vector.broadcast %cst_5 : f32 to vector<128x128xf32>
    %8 = arith.maximumf %6, %7 : vector<128x128xf32>
    %9 = arith.truncf %8 : vector<128x128xf32> to vector<128x128xbf16>
    %c0_6 = arith.constant 0 : index
    %c0_7 = arith.constant 0 : index
    %c0_8 = arith.constant 0 : index
    %10 = vector.load %arg4[%c0_6, %c0_7, %c0_8] : memref<1x128x128xbf16, #tpu.memory_space<vmem>>, vector<1x128x128xbf16>
    %11 = vector.shape_cast %10 : vector<1x128x128xbf16> to vector<128x128xbf16>
    %cst_9 = arith.constant dense<0.000000e+00> : vector<128x128xf32>
    %12 = tpu.matmul %9, %11, %cst_9 {dimension_numbers = #tpu.dot_dimension_numbers<[1], [0], [0], [1], [0, 0, 1, 1], [], []>} : vector<128x128xbf16>, vector<128x128xbf16>, vector<128x128xf32> -> vector<128x128xf32>
    %c0_10 = arith.constant 0 : index
    %c0_11 = arith.constant 0 : index
    %c0_12 = arith.constant 0 : index
    %13 = vector.load %arg5[%c0_10, %c0_11, %c0_12] : memref<1x1x128xf32, #tpu.memory_space<vmem>>, vector<1x1x128xf32>
    %14 = vector.shape_cast %13 : vector<1x1x128xf32> to vector<1x128xf32>
    %15 = vector.broadcast %14 : vector<1x128xf32> to vector<128x128xf32>
    %16 = arith.addf %12, %15 : vector<128x128xf32>
    %cst_13 = arith.constant 0.000000e+00 : f32
    %17 = vector.broadcast %cst_13 : f32 to vector<128x128xf32>
    %18 = arith.maximumf %16, %17 : vector<128x128xf32>
    %c0_14 = arith.constant 0 : index
    %c0_15 = arith.constant 0 : index
    %19 = vector.load %arg6[%c0_14, %c0_15] : memref<1x128xf32, #tpu.memory_space<vmem>>, vector<1x128xf32>
    %20 = vector.broadcast %19 : vector<1x128xf32> to vector<128x128xf32>
    %21 = arith.mulf %18, %20 : vector<128x128xf32>
    %cst_16 = arith.constant dense<0.000000e+00> : vector<128xf32>
    %22 = vector.multi_reduction <add>, %21, %cst_16 [1] : vector<128x128xf32> to vector<128xf32>
    %23 = vector.shape_cast %22 : vector<128xf32> to vector<128x1xf32>
    %c0_17 = arith.constant 0 : index
    %c0_18 = arith.constant 0 : index
    %24 = memref.load %arg7[%c0_17, %c0_18] : memref<1x1xf32, #tpu.memory_space<smem>>
    %25 = vector.broadcast %24 : f32 to vector<128x1xf32>
    %26 = arith.addf %23, %25 : vector<128x1xf32>
    %27 = arith.negf %26 : vector<128x1xf32>
    %28 = math.exp %27 : vector<128x1xf32>
    %cst_19 = arith.constant 1.000000e+00 : f32
    %29 = vector.broadcast %cst_19 : f32 to vector<128x1xf32>
    %30 = arith.addf %29, %28 : vector<128x1xf32>
    %31 = arith.divf %29, %30 : vector<128x1xf32>
    %c0_20 = arith.constant 0 : index
    %c0_21 = arith.constant 0 : index
    %32 = vector.load %arg8[%c0_20, %c0_21] : memref<128x1xf32, #tpu.memory_space<vmem>>, vector<128x1xf32>
    tpu.vector_store %arg8[%c0_20, %c0_21], %31 {strides = array<i32>} : memref<128x1xf32, #tpu.memory_space<vmem>>, vector<128x1xf32>,
    return
  }
  func.func @transform_0(%arg0: i32) -> (i32, i32) {
    %c0_i32 = arith.constant 0 : i32
    %c0_i32_0 = arith.constant 0 : i32
    return %arg0, %c0_i32 : i32, i32
  }
  func.func @transform_1(%arg0: i32) -> (i32, i32) {
    %c0_i32 = arith.constant 0 : i32
    %c0_i32_0 = arith.constant 0 : i32
    %c0_i32_1 = arith.constant 0 : i32
    return %c0_i32, %c0_i32_0 : i32, i32
  }
  func.func @transform_2(%arg0: i32) -> (i32, i32) {
    %c0_i32 = arith.constant 0 : i32
    %c0_i32_0 = arith.constant 0 : i32
    %c0_i32_1 = arith.constant 0 : i32
    return %c0_i32, %c0_i32_0 : i32, i32
  }
  func.func @transform_3(%arg0: i32) -> (i32, i32, i32) {
    %c0_i32 = arith.constant 0 : i32
    %c0_i32_0 = arith.constant 0 : i32
    %c0_i32_1 = arith.constant 0 : i32
    %c0_i32_2 = arith.constant 0 : i32
    return %c0_i32, %c0_i32_0, %c0_i32_1 : i32, i32, i32
  }
  func.func @transform_4(%arg0: i32) -> (i32, i32, i32) {
    %c0_i32 = arith.constant 0 : i32
    %c0_i32_0 = arith.constant 0 : i32
    %c0_i32_1 = arith.constant 0 : i32
    %c0_i32_2 = arith.constant 0 : i32
    return %c0_i32, %c0_i32_0, %c0_i32_1 : i32, i32, i32
  }
  func.func @transform_5(%arg0: i32) -> (i32, i32) {
    %c0_i32 = arith.constant 0 : i32
    %c0_i32_0 = arith.constant 0 : i32
    %c0_i32_1 = arith.constant 0 : i32
    return %c0_i32, %c0_i32_0 : i32, i32
  }
  func.func @transform_6(%arg0: i32) -> (i32, i32) {
    %c0_i32 = arith.constant 0 : i32
    %c0_i32_0 = arith.constant 0 : i32
    %c0_i32_1 = arith.constant 0 : i32
    return %c0_i32, %c0_i32_0 : i32, i32
  }
  func.func @transform_7(%arg0: i32) -> (i32, i32) {
    %c0_i32 = arith.constant 0 : i32
    %c0_i32_0 = arith.constant 0 : i32
    return %arg0, %c0_i32 : i32, i32
  }
}

module attributes {stable_mosaic.version = 11 : i64} {
  func.func @_discrim_kernel(%arg0: i32, %arg1: memref<128x16xf32, #tpu.memory_space<vmem>>, %arg2: memref<16x128xbf16, #tpu.memory_space<vmem>>, %arg3: memref<1x128xf32, #tpu.memory_space<vmem>>, %arg4: memref<1x128x128xbf16, #tpu.memory_space<vmem>>, %arg5: memref<1x1x128xf32, #tpu.memory_space<vmem>>, %arg6: memref<1x128xf32, #tpu.memory_space<vmem>>, %arg7: memref<1x1xf32, #tpu.memory_space<smem>>, %arg8: memref<128x1xf32, #tpu.memory_space<vmem>>) attributes {dimension_semantics = [#tpu.dimension_semantics<parallel>], iteration_bounds = array<i64: 1>, scalar_prefetch = 0 : i64, scratch_operands = 0 : i64, tpu.core_type = #tpu.core_type<tc>, window_params = [{transform_indices = @transform_0, window_bounds = array<i64: 128, 16>}, {pipeline_mode = #tpu.pipeline_mode<synchronous>, transform_indices = @transform_1, window_bounds = array<i64: 16, 128>}, {pipeline_mode = #tpu.pipeline_mode<synchronous>, transform_indices = @transform_2, window_bounds = array<i64: 1, 128>}, {pipeline_mode = #tpu.pipeline_mode<synchronous>, transform_indices = @transform_3, window_bounds = array<i64: 1, 128, 128>}, {pipeline_mode = #tpu.pipeline_mode<synchronous>, transform_indices = @transform_4, window_bounds = array<i64: 1, 1, 128>}, {pipeline_mode = #tpu.pipeline_mode<synchronous>, transform_indices = @transform_5, window_bounds = array<i64: 1, 128>}, {transform_indices = @transform_6, window_bounds = array<i64: 1, 1>}, {transform_indices = @transform_7, window_bounds = array<i64: 128, 1>}]} {
    %c0 = arith.constant 0 : index
    %c0_0 = arith.constant 0 : index
    %0 = vector.load %arg1[%c0, %c0_0] : memref<128x16xf32, #tpu.memory_space<vmem>>, vector<128x16xf32>
    %1 = arith.truncf %0 : vector<128x16xf32> to vector<128x16xbf16>
    %c0_1 = arith.constant 0 : index
    %c0_2 = arith.constant 0 : index
    %2 = vector.load %arg2[%c0_1, %c0_2] : memref<16x128xbf16, #tpu.memory_space<vmem>>, vector<16x128xbf16>
    %cst = arith.constant dense<0.000000e+00> : vector<128x128xf32>
    %3 = tpu.matmul %1, %2, %cst {dimension_numbers = #tpu.dot_dimension_numbers<[1], [0], [0], [1], [0, 0, 1, 1], [], []>} : vector<128x16xbf16>, vector<16x128xbf16>, vector<128x128xf32> -> vector<128x128xf32>
    %c0_3 = arith.constant 0 : index
    %c0_4 = arith.constant 0 : index
    %4 = vector.load %arg3[%c0_3, %c0_4] : memref<1x128xf32, #tpu.memory_space<vmem>>, vector<1x128xf32>
    %5 = vector.broadcast %4 : vector<1x128xf32> to vector<128x128xf32>
    %6 = arith.addf %3, %5 : vector<128x128xf32>
    %cst_5 = arith.constant 0.000000e+00 : f32
    %7 = vector.broadcast %cst_5 : f32 to vector<128x128xf32>
    %8 = arith.maximumf %6, %7 : vector<128x128xf32>
    %9 = arith.truncf %8 : vector<128x128xf32> to vector<128x128xbf16>
    %c0_6 = arith.constant 0 : index
    %c0_7 = arith.constant 0 : index
    %c0_8 = arith.constant 0 : index
    %10 = vector.load %arg4[%c0_6, %c0_7, %c0_8] : memref<1x128x128xbf16, #tpu.memory_space<vmem>>, vector<1x128x128xbf16>
    %11 = vector.shape_cast %10 : vector<1x128x128xbf16> to vector<128x128xbf16>
    %cst_9 = arith.constant dense<0.000000e+00> : vector<128x128xf32>
    %12 = tpu.matmul %9, %11, %cst_9 {dimension_numbers = #tpu.dot_dimension_numbers<[1], [0], [0], [1], [0, 0, 1, 1], [], []>} : vector<128x128xbf16>, vector<128x128xbf16>, vector<128x128xf32> -> vector<128x128xf32>
    %c0_10 = arith.constant 0 : index
    %c0_11 = arith.constant 0 : index
    %c0_12 = arith.constant 0 : index
    %13 = vector.load %arg5[%c0_10, %c0_11, %c0_12] : memref<1x1x128xf32, #tpu.memory_space<vmem>>, vector<1x1x128xf32>
    %14 = vector.shape_cast %13 : vector<1x1x128xf32> to vector<1x128xf32>
    %15 = vector.broadcast %14 : vector<1x128xf32> to vector<128x128xf32>
    %16 = arith.addf %12, %15 : vector<128x128xf32>
    %cst_13 = arith.constant 0.000000e+00 : f32
    %17 = vector.broadcast %cst_13 : f32 to vector<128x128xf32>
    %18 = arith.maximumf %16, %17 : vector<128x128xf32>
    %c0_14 = arith.constant 0 : index
    %c0_15 = arith.constant 0 : index
    %19 = vector.load %arg6[%c0_14, %c0_15] : memref<1x128xf32, #tpu.memory_space<vmem>>, vector<1x128xf32>
    %20 = vector.broadcast %19 : vector<1x128xf32> to vector<128x128xf32>
    %21 = arith.mulf %18, %20 : vector<128x128xf32>
    %cst_16 = arith.constant dense<0.000000e+00> : vector<128xf32>
    %22 = vector.multi_reduction <add>, %21, %cst_16 [1] : vector<128x128xf32> to vector<128xf32>
    %23 = vector.shape_cast %22 : vector<128xf32> to vector<128x1xf32>
    %c0_17 = arith.constant 0 : index
    %c0_18 = arith.constant 0 : index
    %24 = memref.load %arg7[%c0_17, %c0_18] : memref<1x1xf32, #tpu.memory_space<smem>>
    %25 = vector.broadcast %24 : f32 to vector<128x1xf32>
    %26 = arith.addf %23, %25 : vector<128x1xf32>
    %27 = arith.negf %26 : vector<128x1xf32>
    %28 = math.exp %27 : vector<128x1xf32>
    %cst_19 = arith.constant 1.000000e+00 : f32
    %29 = vector.broadcast %cst_19 : f32 to vector<128x1xf32>
    %30 = arith.addf %29, %28 : vector<128x1xf32>
    %31 = arith.divf %29, %30 : vector<128x1xf32>
    %c0_20 = arith.constant 0 : index
    %c0_21 = arith.constant 0 : index
    %32 = vector.load %arg8[%c0_20, %c0_21] : memref<128x1xf32, #tpu.memory_space<vmem>>, vector<128x1xf32>
    tpu.vector_store %arg8[%c0_20, %c0_21], %31 {strides = array<i32>} : memref<128x1xf32, #tpu.memory_space<vmem>>, vector<128x1xf32>,
    return
  }
  func.func @transform_0(%arg0: i32) -> (i32, i32) {
    %c0_i32 = arith.constant 0 : i32
    %c0_i32_0 = arith.constant 0 : i32
    return %arg0, %c0_i32 : i32, i32
  }
  func.func @transform_1(%arg0: i32) -> (i32, i32) {
    %c0_i32 = arith.constant 0 : i32
    %c0_i32_0 = arith.constant 0 : i32
    %c0_i32_1 = arith.constant 0 : i32
    return %c0_i32, %c0_i32_0 : i32, i32
  }
  func.func @transform_2(%arg0: i32) -> (i32, i32) {
    %c0_i32 = arith.constant 0 : i32
    %c0_i32_0 = arith.constant 0 : i32
    %c0_i32_1 = arith.constant 0 : i32
    return %c0_i32, %c0_i32_0 : i32, i32
  }
  func.func @transform_3(%arg0: i32) -> (i32, i32, i32) {
    %c0_i32 = arith.constant 0 : i32
    %c0_i32_0 = arith.constant 0 : i32
    %c0_i32_1 = arith.constant 0 : i32
    %c0_i32_2 = arith.constant 0 : i32
    return %c0_i32, %c0_i32_0, %c0_i32_1 : i32, i32, i32
  }
  func.func @transform_4(%arg0: i32) -> (i32, i32, i32) {
    %c0_i32 = arith.constant 0 : i32
    %c0_i32_0 = arith.constant 0 : i32
    %c0_i32_1 = arith.constant 0 : i32
    %c0_i32_2 = arith.constant 0 : i32
    return %c0_i32, %c0_i32_0, %c0_i32_1 : i32, i32, i32
  }
  func.func @transform_5(%arg0: i32) -> (i32, i32) {
    %c0_i32 = arith.constant 0 : i32
    %c0_i32_0 = arith.constant 0 : i32
    %c0_i32_1 = arith.constant 0 : i32
    return %c0_i32, %c0_i32_0 : i32, i32
  }
  func.func @transform_6(%arg0: i32) -> (i32, i32) {
    %c0_i32 = arith.constant 0 : i32
    %c0_i32_0 = arith.constant 0 : i32
    %c0_i32_1 = arith.constant 0 : i32
    return %c0_i32, %c0_i32_0 : i32, i32
  }
  func.func @transform_7(%arg0: i32) -> (i32, i32) {
    %c0_i32 = arith.constant 0 : i32
    %c0_i32_0 = arith.constant 0 : i32
    return %arg0, %c0_i32 : i32, i32
  }
}

</mosaic_0001>

<llo_original>
// kernel: tpu_custom_call.1
$region0: #{tpu_custom_call.1}
  #allocation0 [shape = 'u32[]', space=smem, size = 0x4, offset = 0x4, fixed_abs, tag = 'smem constant byte address 0x4 - core index']
  #allocation1 [shape = 'u32[144,128]{1,0:T(1,128)}', space=vmem, size = 0x12000, scoped, tag = 'internal scratch']
  #allocation2 [shape = 'f32[1,1]{1,0:T(1,128)S(6)}', space=smem, size = 0x200, scoped, tag = 'scoped memory for tpu_custom_call.1']
  %s0 = inlined_call_operand.vmem [shape: f32[128,16], index: 0, kind: input, shape index: {}]
  %s1 = inlined_call_operand.vmem [shape: bf16[16,128], index: 1, kind: input, shape index: {}]
  %s2 = inlined_call_operand.vmem [shape: f32[1,128], index: 2, kind: input, shape index: {}]
  %s3 = inlined_call_operand.vmem [shape: bf16[1,128,128], index: 3, kind: input, shape index: {}]
  %s4 = inlined_call_operand.vmem [shape: f32[1,1,128], index: 4, kind: input, shape index: {}]
  %s5 = inlined_call_operand.vmem [shape: f32[1,128], index: 5, kind: input, shape index: {}]
  %s6 = inlined_call_operand.<no memory space> [shape: f32[1,1], index: 6, kind: input, shape index: {}]
  %s7 = inlined_call_operand.vmem [shape: f32[128,1], index: 7, kind: output, shape index: {}]
  %s8 = sld [smem:[#allocation0]]
  $region38: #{tpu_custom_call.1} parent=0
    _
  %s10 = ssub.s32 1, %s8
  %s11 = scalar_select 0, %s10, %s8
  %12 = sst [smem:[#allocation2]] %s6
  // Predicated region
  $region2: #{tpu_custom_call.1} parent=0 // pred_check
    _
  $region3: #{tpu_custom_call.1} parent=0 // pred_check_branch
    %14 = sbr.rel (0) target = $region5
  $region4: #{tpu_custom_call.1} parent=0 // pred_region
    _
  $region5: #{tpu_custom_call.1} parent=0 // pred_fallthru
    _
  // Predicated region
  $region6: #{tpu_custom_call.1} parent=0 // pred_check
    _
  $region7: #{tpu_custom_call.1} parent=0 // pred_check_branch
    %16 = sbr.rel (0) target = $region9
  $region8: #{tpu_custom_call.1} parent=0 // pred_region
    _
  $region9: #{tpu_custom_call.1} parent=0 // pred_fallthru
    _
  // Predicated region
  $region10: #{tpu_custom_call.1} parent=0 // pred_check
    _
  $region11: #{tpu_custom_call.1} parent=0 // pred_check_branch
    %18 = sbr.rel (0) target = $region13
  $region12: #{tpu_custom_call.1} parent=0 // pred_region
    _
  $region13: #{tpu_custom_call.1} parent=0 // pred_fallthru
    _
  // Predicated region
  $region14: #{tpu_custom_call.1} parent=0 // pred_check
    _
  $region15: #{tpu_custom_call.1} parent=0 // pred_check_branch
    %20 = sbr.rel (0) target = $region17
  $region16: #{tpu_custom_call.1} parent=0 // pred_region
    _
  $region17: #{tpu_custom_call.1} parent=0 // pred_fallthru
    _
  // Predicated region
  $region18: #{tpu_custom_call.1} parent=0 // pred_check
    _
  $region19: #{tpu_custom_call.1} parent=0 // pred_check_branch
    %22 = sbr.rel (0) target = $region21
  $region20: #{tpu_custom_call.1} parent=0 // pred_region
    _
  $region21: #{tpu_custom_call.1} parent=0 // pred_fallthru
    _
  // Predicated region
  $region22: #{tpu_custom_call.1} parent=0 // pred_check
    _
  $region23: #{tpu_custom_call.1} parent=0 // pred_check_branch
    %24 = sbr.rel (0) target = $region25
  $region24: #{tpu_custom_call.1} parent=0 // pred_region
    _
  $region25: #{tpu_custom_call.1} parent=0 // pred_fallthru
    _
  // Predicated region
  $region26: #{tpu_custom_call.1} parent=0 // pred_check
    _
  $region27: #{tpu_custom_call.1} parent=0 // pred_check_branch
    %26 = sbr.rel (0) target = $region29
  $region28: #{tpu_custom_call.1} parent=0 // pred_region
    _
  $region29: #{tpu_custom_call.1} parent=0 // pred_fallthru
    _
  %v28 = vld [vmem:[%s0] sm:$0xff]
  %v29 = vld [vmem:[%s0 + $0x8] sm:$0xff]
  %v30 = vld [vmem:[%s0 + $0x10] sm:$0xff]
  %v31 = vld [vmem:[%s0 + $0x18] sm:$0xff]
  %v32 = vld [vmem:[%s0 + $0x20] sm:$0xff]
  %v33 = vld [vmem:[%s0 + $0x28] sm:$0xff]
  %v34 = vld [vmem:[%s0 + $0x30] sm:$0xff]
  %v35 = vld [vmem:[%s0 + $0x38] sm:$0xff]
  %v36 = vld [vmem:[%s0 + $0x40] sm:$0xff]
  %v37 = vld [vmem:[%s0 + $0x48] sm:$0xff]
  %v38 = vld [vmem:[%s0 + $0x50] sm:$0xff]
  %v39 = vld [vmem:[%s0 + $0x58] sm:$0xff]
  %v40 = vld [vmem:[%s0 + $0x60] sm:$0xff]
  %v41 = vld [vmem:[%s0 + $0x68] sm:$0xff]
  %v42 = vld [vmem:[%s0 + $0x70] sm:$0xff]
  %v43 = vld [vmem:[%s0 + $0x78] sm:$0xff]
  %v44 = vpack.c.bf16 %v29, %v28
  %v45 = vpack.c.bf16 %v31, %v30
  %v46 = vpack.c.bf16 %v33, %v32
  %v47 = vpack.c.bf16 %v35, %v34
  %v48 = vpack.c.bf16 %v37, %v36
  %v49 = vpack.c.bf16 %v39, %v38
  %v50 = vpack.c.bf16 %v41, %v40
  %v51 = vpack.c.bf16 %v43, %v42
  %v52 = vld [vmem:[%s1] sm:$0xf]
  %v53 = vld [vmem:[%s1 + $0x4] sm:$0xf]
  %v54 = vld [vmem:[%s2] sm:$0x1]
  %v56 = vlaneseq
  %v57 = vshrl.u32 %v56, 7
  %v58 = vsub.s32 0, %v57
  %v59 = vrot.slane %v54, %v58
  %v63 = vunpack.c.l.b16 %v52
  %v64 = vunpack.c.l.b16 %v53
  %v65 = vpack.c.b16 %v64, %v63
  %vm67 = vcmask 130048
  %v69 = vsel %vm67, %v44, 0
  %v72 = vsel %vm67, %v45, 0
  %v75 = vsel %vm67, %v46, 0
  %v78 = vsel %vm67, %v47, 0
  %v81 = vsel %vm67, %v48, 0
  %v84 = vsel %vm67, %v49, 0
  %v87 = vsel %vm67, %v50, 0
  %v90 = vsel %vm67, %v51, 0
  %92 = vmatprep.subr.bf16.mxu0 0
  %93 = vmatpush1.bf16.msra.mxu0 0
  %94 = vmatprep.subr.bf16.mxu0 0
  %95 = vmatpush1.bf16.msra.mxu0 0
  %96 = vmatprep.subr.bf16.mxu0 0
  %97 = vmatpush1.bf16.msra.mxu0 0
  %98 = vmatprep.subr.bf16.mxu0 0
  %99 = vmatpush1.bf16.msra.mxu0 0
  %100 = vmatprep.subr.bf16.mxu0 0
  %101 = vmatpush1.bf16.msra.mxu0 0
  %102 = vmatprep.subr.bf16.mxu0 0
  %103 = vmatpush1.bf16.msra.mxu0 0
  %104 = vmatprep.subr.bf16.mxu0 0
  %105 = vmatpush1.bf16.msra.mxu0 0
  %106 = vmatprep.subr.bf16.mxu0 0
  %107 = vmatpush1.bf16.msra.mxu0 %v65
  %108 = vmatprep.subr.bf16.mxu0 0
  %109 = vmatpush2.bf16.msra.mxu0 0
  %110 = vmatprep.subr.bf16.mxu0 0
  %111 = vmatpush2.bf16.msra.mxu0 0
  %112 = vmatprep.subr.bf16.mxu0 0
  %113 = vmatpush2.bf16.msra.mxu0 0
  %114 = vmatprep.subr.bf16.mxu0 0
  %115 = vmatpush2.bf16.msra.mxu0 0
  %116 = vmatprep.subr.bf16.mxu0 0
  %117 = vmatpush2.bf16.msra.mxu0 0
  %118 = vmatprep.subr.bf16.mxu0 0
  %119 = vmatpush2.bf16.msra.mxu0 0
  %120 = vmatprep.subr.bf16.mxu0 0
  %121 = vmatpush2.bf16.msra.mxu0 0
  %122 = vmatprep.subr.bf16.mxu0 0
  %123 = vmatpush2.bf16.msra.mxu0 0
  %124 = vmatprep.mubr.bf16.mxu0 0
  %125 = vmatmul.mubr.bf16.gmra.mxu0 %v69
  %v126 = vpop.f32.mrf.mxu0
  %v127 = vadd.f32 %v59, %v126
  %v128 = vpop.f32.mrf.mxu0
  %v129 = vpop.f32.mrf.mxu0
  %v130 = vadd.f32 %v59, %v129
  %v131 = vpop.f32.mrf.mxu0
  %132 = vmatprep.mubr.bf16.mxu0 0
  %133 = vmatmul.mubr.bf16.gmra.mxu0 %v72
  %v134 = vpop.f32.mrf.mxu0
  %v135 = vadd.f32 %v59, %v134
  %v136 = vpop.f32.mrf.mxu0
  %v137 = vpop.f32.mrf.mxu0
  %v138 = vadd.f32 %v59, %v137
  %v139 = vpop.f32.mrf.mxu0
  %140 = vmatprep.mubr.bf16.mxu0 0
  %141 = vmatmul.mubr.bf16.gmra.mxu0 %v75
  %v142 = vpop.f32.mrf.mxu0
  %v143 = vadd.f32 %v59, %v142
  %v144 = vpop.f32.mrf.mxu0
  %v145 = vpop.f32.mrf.mxu0
  %v146 = vadd.f32 %v59, %v145
  %v147 = vpop.f32.mrf.mxu0
  %148 = vmatprep.mubr.bf16.mxu0 0
  %149 = vmatmul.mubr.bf16.gmra.mxu0 %v78
  %v150 = vpop.f32.mrf.mxu0
  %v151 = vadd.f32 %v59, %v150
  %v152 = vpop.f32.mrf.mxu0
  %v153 = vpop.f32.mrf.mxu0
  %v154 = vadd.f32 %v59, %v153
  %v155 = vpop.f32.mrf.mxu0
  %156 = vmatprep.mubr.bf16.mxu0 0
  %157 = vmatmul.mubr.bf16.gmra.mxu0 %v81
  %v158 = vpop.f32.mrf.mxu0
  %v159 = vadd.f32 %v59, %v158
  %v160 = vpop.f32.mrf.mxu0
  %v161 = vpop.f32.mrf.mxu0
  %v162 = vadd.f32 %v59, %v161
  %v163 = vpop.f32.mrf.mxu0
  %164 = vmatprep.mubr.bf16.mxu0 0
  %165 = vmatmul.mubr.bf16.gmra.mxu0 %v84
  %v166 = vpop.f32.mrf.mxu0
  %v167 = vadd.f32 %v59, %v166
  %v168 = vpop.f32.mrf.mxu0
  %v169 = vpop.f32.mrf.mxu0
  %v170 = vadd.f32 %v59, %v169
  %v171 = vpop.f32.mrf.mxu0
  %172 = vmatprep.mubr.bf16.mxu0 0
  %173 = vmatmul.mubr.bf16.gmra.mxu0 %v87
  %v174 = vpop.f32.mrf.mxu0
  %v175 = vadd.f32 %v59, %v174
  %v176 = vpop.f32.mrf.mxu0
  %v177 = vpop.f32.mrf.mxu0
  %v178 = vadd.f32 %v59, %v177
  %v179 = vpop.f32.mrf.mxu0
  %180 = vmatprep.mubr.bf16.mxu0 0
  %181 = vmatmul.mubr.bf16.gmra.mxu0 %v90
  %v182 = vpop.f32.mrf.mxu0
  %v183 = vadd.f32 %v59, %v182
  %v184 = vpop.f32.mrf.mxu0
  %v185 = vpop.f32.mrf.mxu0
  %v186 = vadd.f32 %v59, %v185
  %v187 = vpop.f32.mrf.mxu0
  %188 = vdwg.mxu0
  %v189 = vmax.f32 %v127, 0.0
  %v190 = vmax.f32 %v130, 0.0
  %v191 = vmax.f32 %v135, 0.0
  %v192 = vmax.f32 %v138, 0.0
  %v193 = vmax.f32 %v143, 0.0
  %v194 = vmax.f32 %v146, 0.0
  %v195 = vmax.f32 %v151, 0.0
  %v196 = vmax.f32 %v154, 0.0
  %v197 = vmax.f32 %v159, 0.0
  %v198 = vmax.f32 %v162, 0.0
  %v199 = vmax.f32 %v167, 0.0
  %v200 = vmax.f32 %v170, 0.0
  %v201 = vmax.f32 %v175, 0.0
  %v202 = vmax.f32 %v178, 0.0
  %v203 = vmax.f32 %v183, 0.0
  %v204 = vmax.f32 %v186, 0.0
  %v205 = vpack.c.bf16 %v190, %v189
  %v206 = vpack.c.bf16 %v192, %v191
  %v207 = vpack.c.bf16 %v194, %v193
  %v208 = vpack.c.bf16 %v196, %v195
  %v209 = vpack.c.bf16 %v198, %v197
  %v210 = vpack.c.bf16 %v200, %v199
  %v211 = vpack.c.bf16 %v202, %v201
  %v212 = vpack.c.bf16 %v204, %v203
  %v213 = vld [vmem:[%s3] sm:$0xf]
  %v214 = vld [vmem:[%s3 + $0x4] sm:$0xf]
  %v215 = vld [vmem:[%s3 + $0x8] sm:$0xf]
  %v216 = vld [vmem:[%s3 + $0xc] sm:$0xf]
  %v217 = vld [vmem:[%s3 + $0x10] sm:$0xf]
  %v218 = vld [vmem:[%s3 + $0x14] sm:$0xf]
  %v219 = vld [vmem:[%s3 + $0x18] sm:$0xf]
  %v220 = vld [vmem:[%s3 + $0x1c] sm:$0xf]
  %v221 = vld [vmem:[%s3 + $0x20] sm:$0xf]
  %v222 = vld [vmem:[%s3 + $0x24] sm:$0xf]
  %v223 = vld [vmem:[%s3 + $0x28] sm:$0xf]
  %v224 = vld [vmem:[%s3 + $0x2c] sm:$0xf]
  %v225 = vld [vmem:[%s3 + $0x30] sm:$0xf]
  %v226 = vld [vmem:[%s3 + $0x34] sm:$0xf]
  %v227 = vld [vmem:[%s3 + $0x38] sm:$0xf]
  %v228 = vld [vmem:[%s3 + $0x3c] sm:$0xf]
  %v229 = vld [vmem:[%s4] sm:$0x1]
  %v231 = vlaneseq
  %v232 = vshrl.u32 %v231, 7
  %v233 = vsub.s32 0, %v232
  %v234 = vrot.slane %v229, %v233
  %v252 = vunpack.c.l.b16 %v213
  %v253 = vunpack.c.l.b16 %v214
  %v254 = vunpack.c.l.b16 %v215
  %v255 = vunpack.c.l.b16 %v216
  %v256 = vunpack.c.l.b16 %v217
  %v257 = vunpack.c.l.b16 %v218
  %v258 = vunpack.c.l.b16 %v219
  %v259 = vunpack.c.l.b16 %v220
  %v260 = vunpack.c.l.b16 %v221
  %v261 = vunpack.c.l.b16 %v222
  %v262 = vunpack.c.l.b16 %v223
  %v263 = vunpack.c.l.b16 %v224
  %v264 = vunpack.c.l.b16 %v225
  %v265 = vunpack.c.l.b16 %v226
  %v266 = vunpack.c.l.b16 %v227
  %v267 = vunpack.c.l.b16 %v228
  %v268 = vpack.c.b16 %v253, %v252
  %v269 = vpack.c.b16 %v255, %v254
  %v270 = vpack.c.b16 %v257, %v256
  %v271 = vpack.c.b16 %v259, %v258
  %v272 = vpack.c.b16 %v261, %v260
  %v273 = vpack.c.b16 %v263, %v262
  %v274 = vpack.c.b16 %v265, %v264
  %v275 = vpack.c.b16 %v267, %v266
  %284 = vmatprep.subr.bf16.mxu0 0
  %285 = vmatpush1.bf16.msra.mxu0 %v275
  %286 = vmatprep.subr.bf16.mxu0 0
  %287 = vmatpush1.bf16.msra.mxu0 %v274
  %288 = vmatprep.subr.bf16.mxu0 0
  %289 = vmatpush1.bf16.msra.mxu0 %v273
  %290 = vmatprep.subr.bf16.mxu0 0
  %291 = vmatpush1.bf16.msra.mxu0 %v272
  %292 = vmatprep.subr.bf16.mxu0 0
  %293 = vmatpush1.bf16.msra.mxu0 %v271
  %294 = vmatprep.subr.bf16.mxu0 0
  %295 = vmatpush1.bf16.msra.mxu0 %v270
  %296 = vmatprep.subr.bf16.mxu0 0
  %297 = vmatpush1.bf16.msra.mxu0 %v269
  %298 = vmatprep.subr.bf16.mxu0 0
  %299 = vmatpush1.bf16.msra.mxu0 %v268
  %300 = vmatprep.subr.bf16.mxu0 0
  %301 = vmatpush2.bf16.msra.mxu0 0
  %302 = vmatprep.subr.bf16.mxu0 0
  %303 = vmatpush2.bf16.msra.mxu0 0
  %304 = vmatprep.subr.bf16.mxu0 0
  %305 = vmatpush2.bf16.msra.mxu0 0
  %306 = vmatprep.subr.bf16.mxu0 0
  %307 = vmatpush2.bf16.msra.mxu0 0
  %308 = vmatprep.subr.bf16.mxu0 0
  %309 = vmatpush2.bf16.msra.mxu0 0
  %310 = vmatprep.subr.bf16.mxu0 0
  %311 = vmatpush2.bf16.msra.mxu0 0
  %312 = vmatprep.subr.bf16.mxu0 0
  %313 = vmatpush2.bf16.msra.mxu0 0
  %314 = vmatprep.subr.bf16.mxu0 0
  %315 = vmatpush2.bf16.msra.mxu0 0
  %316 = vmatprep.mubr.bf16.mxu0 0
  %317 = vmatmul.mubr.bf16.gmra.mxu0 %v205
  %v318 = vpop.f32.mrf.mxu0
  %v319 = vadd.f32 %v234, %v318
  %v320 = vpop.f32.mrf.mxu0
  %v321 = vpop.f32.mrf.mxu0
  %v322 = vadd.f32 %v234, %v321
  %v323 = vpop.f32.mrf.mxu0
  %324 = vmatprep.mubr.bf16.mxu0 0
  %325 = vmatmul.mubr.bf16.gmra.mxu0 %v206
  %v326 = vpop.f32.mrf.mxu0
  %v327 = vadd.f32 %v234, %v326
  %v328 = vpop.f32.mrf.mxu0
  %v329 = vpop.f32.mrf.mxu0
  %v330 = vadd.f32 %v234, %v329
  %v331 = vpop.f32.mrf.mxu0
  %332 = vmatprep.mubr.bf16.mxu0 0
  %333 = vmatmul.mubr.bf16.gmra.mxu0 %v207
  %v334 = vpop.f32.mrf.mxu0
  %v335 = vadd.f32 %v234, %v334
  %v336 = vpop.f32.mrf.mxu0
  %v337 = vpop.f32.mrf.mxu0
  %v338 = vadd.f32 %v234, %v337
  %v339 = vpop.f32.mrf.mxu0
  %340 = vmatprep.mubr.bf16.mxu0 0
  %341 = vmatmul.mubr.bf16.gmra.mxu0 %v208
  %v342 = vpop.f32.mrf.mxu0
  %v343 = vadd.f32 %v234, %v342
  %v344 = vpop.f32.mrf.mxu0
  %v345 = vpop.f32.mrf.mxu0
  %v346 = vadd.f32 %v234, %v345
  %v347 = vpop.f32.mrf.mxu0
  %348 = vmatprep.mubr.bf16.mxu0 0
  %349 = vmatmul.mubr.bf16.gmra.mxu0 %v209
  %v350 = vpop.f32.mrf.mxu0
  %v351 = vadd.f32 %v234, %v350
  %v352 = vpop.f32.mrf.mxu0
  %v353 = vpop.f32.mrf.mxu0
  %v354 = vadd.f32 %v234, %v353
  %v355 = vpop.f32.mrf.mxu0
  %356 = vmatprep.mubr.bf16.mxu0 0
  %357 = vmatmul.mubr.bf16.gmra.mxu0 %v210
  %v358 = vpop.f32.mrf.mxu0
  %v359 = vadd.f32 %v234, %v358
  %v360 = vpop.f32.mrf.mxu0
  %v361 = vpop.f32.mrf.mxu0
  %v362 = vadd.f32 %v234, %v361
  %v363 = vpop.f32.mrf.mxu0
  %364 = vmatprep.mubr.bf16.mxu0 0
  %365 = vmatmul.mubr.bf16.gmra.mxu0 %v211
  %v366 = vpop.f32.mrf.mxu0
  %v367 = vadd.f32 %v234, %v366
  %v368 = vpop.f32.mrf.mxu0
  %v369 = vpop.f32.mrf.mxu0
  %v370 = vadd.f32 %v234, %v369
  %v371 = vpop.f32.mrf.mxu0
  %372 = vmatprep.mubr.bf16.mxu0 0
  %373 = vmatmul.mubr.bf16.gmra.mxu0 %v212
  %v374 = vpop.f32.mrf.mxu0
  %v375 = vadd.f32 %v234, %v374
  %v376 = vpop.f32.mrf.mxu0
  %v377 = vpop.f32.mrf.mxu0
  %v378 = vadd.f32 %v234, %v377
  %v379 = vpop.f32.mrf.mxu0
  %380 = vdwg.mxu0
  %v381 = vmax.f32 %v319, 0.0
  %v382 = vmax.f32 %v322, 0.0
  %v383 = vmax.f32 %v327, 0.0
  %v384 = vmax.f32 %v330, 0.0
  %v385 = vmax.f32 %v335, 0.0
  %v386 = vmax.f32 %v338, 0.0
  %v387 = vmax.f32 %v343, 0.0
  %v388 = vmax.f32 %v346, 0.0
  %v389 = vmax.f32 %v351, 0.0
  %v390 = vmax.f32 %v354, 0.0
  %v391 = vmax.f32 %v359, 0.0
  %v392 = vmax.f32 %v362, 0.0
  %v393 = vmax.f32 %v367, 0.0
  %v394 = vmax.f32 %v370, 0.0
  %v395 = vmax.f32 %v375, 0.0
  %v396 = vmax.f32 %v378, 0.0
  %v397 = vld [vmem:[%s5] sm:$0x1]
  %v399 = vlaneseq
  %v400 = vshrl.u32 %v399, 7
  %v401 = vsub.s32 0, %v400
  %v402 = vrot.slane %v397, %v401
  %v404 = vmul.f32 %v381, %v402
  %v405 = vmul.f32 %v382, %v402
  %v406 = vmul.f32 %v383, %v402
  %v407 = vmul.f32 %v384, %v402
  %v408 = vmul.f32 %v385, %v402
  %v409 = vmul.f32 %v386, %v402
  %v410 = vmul.f32 %v387, %v402
  %v411 = vmul.f32 %v388, %v402
  %v412 = vmul.f32 %v389, %v402
  %v413 = vmul.f32 %v390, %v402
  %v414 = vmul.f32 %v391, %v402
  %v415 = vmul.f32 %v392, %v402
  %v416 = vmul.f32 %v393, %v402
  %v417 = vmul.f32 %v394, %v402
  %v418 = vmul.f32 %v395, %v402
  %v419 = vmul.f32 %v396, %v402
  %420 = vadd.xlane.f32.xlu0 %v404
  %v421 = vpop.xlane.xlu0 %420
  %422 = vadd.xlane.f32.xlu0 %v405
  %v423 = vpop.xlane.xlu0 %422
  %424 = vadd.xlane.f32.xlu0 %v406
  %v425 = vpop.xlane.xlu0 %424
  %426 = vadd.xlane.f32.xlu0 %v407
  %v427 = vpop.xlane.xlu0 %426
  %428 = vadd.xlane.f32.xlu0 %v408
  %v429 = vpop.xlane.xlu0 %428
  %430 = vadd.xlane.f32.xlu0 %v409
  %v431 = vpop.xlane.xlu0 %430
  %432 = vadd.xlane.f32.xlu0 %v410
  %v433 = vpop.xlane.xlu0 %432
  %434 = vadd.xlane.f32.xlu0 %v411
  %v435 = vpop.xlane.xlu0 %434
  %436 = vadd.xlane.f32.xlu0 %v412
  %v437 = vpop.xlane.xlu0 %436
  %438 = vadd.xlane.f32.xlu0 %v413
  %v439 = vpop.xlane.xlu0 %438
  %440 = vadd.xlane.f32.xlu0 %v414
  %v441 = vpop.xlane.xlu0 %440
  %442 = vadd.xlane.f32.xlu0 %v415
  %v443 = vpop.xlane.xlu0 %442
  %444 = vadd.xlane.f32.xlu0 %v416
  %v445 = vpop.xlane.xlu0 %444
  %446 = vadd.xlane.f32.xlu0 %v417
  %v447 = vpop.xlane.xlu0 %446
  %448 = vadd.xlane.f32.xlu0 %v418
  %v449 = vpop.xlane.xlu0 %448
  %450 = vadd.xlane.f32.xlu0 %v419
  %v451 = vpop.xlane.xlu0 %450
  %s452 = sld [smem:[#allocation2]]
  %v453 = vstv %s452
  %v454 = vadd.f32 %v421, %v453
  %v455 = vadd.f32 %v423, %v453
  %v456 = vadd.f32 %v425, %v453
  %v457 = vadd.f32 %v427, %v453
  %v458 = vadd.f32 %v429, %v453
  %v459 = vadd.f32 %v431, %v453
  %v460 = vadd.f32 %v433, %v453
  %v461 = vadd.f32 %v435, %v453
  %v462 = vadd.f32 %v437, %v453
  %v463 = vadd.f32 %v439, %v453
  %v464 = vadd.f32 %v441, %v453
  %v465 = vadd.f32 %v443, %v453
  %v466 = vadd.f32 %v445, %v453
  %v467 = vadd.f32 %v447, %v453
  %v468 = vadd.f32 %v449, %v453
  %v469 = vadd.f32 %v451, %v453
  %v470 = vxor.u32 %v454, 2147483648
  %v471 = vxor.u32 %v455, 2147483648
  %v472 = vxor.u32 %v456, 2147483648
  %v473 = vxor.u32 %v457, 2147483648
  %v474 = vxor.u32 %v458, 2147483648
  %v475 = vxor.u32 %v459, 2147483648
  %v476 = vxor.u32 %v460, 2147483648
  %v477 = vxor.u32 %v461, 2147483648
  %v478 = vxor.u32 %v462, 2147483648
  %v479 = vxor.u32 %v463, 2147483648
  %v480 = vxor.u32 %v464, 2147483648
  %v481 = vxor.u32 %v465, 2147483648
  %v482 = vxor.u32 %v466, 2147483648
  %v483 = vxor.u32 %v467, 2147483648
  %v484 = vxor.u32 %v468, 2147483648
  %v485 = vxor.u32 %v469, 2147483648
  %v486 = vmul.f32 %v470, 1.442695
  %v487 = vpow.pop %v486
  %v488 = vmul.f32 %v471, 1.442695
  %v489 = vpow.pop %v488
  %v490 = vmul.f32 %v472, 1.442695
  %v491 = vpow.pop %v490
  %v492 = vmul.f32 %v473, 1.442695
  %v493 = vpow.pop %v492
  %v494 = vmul.f32 %v474, 1.442695
  %v495 = vpow.pop %v494
  %v496 = vmul.f32 %v475, 1.442695
  %v497 = vpow.pop %v496
  %v498 = vmul.f32 %v476, 1.442695
  %v499 = vpow.pop %v498
  %v500 = vmul.f32 %v477, 1.442695
  %v501 = vpow.pop %v500
  %v502 = vmul.f32 %v478, 1.442695
  %v503 = vpow.pop %v502
  %v504 = vmul.f32 %v479, 1.442695
  %v505 = vpow.pop %v504
  %v506 = vmul.f32 %v480, 1.442695
  %v507 = vpow.pop %v506
  %v508 = vmul.f32 %v481, 1.442695
  %v509 = vpow.pop %v508
  %v510 = vmul.f32 %v482, 1.442695
  %v511 = vpow.pop %v510
  %v512 = vmul.f32 %v483, 1.442695
  %v513 = vpow.pop %v512
  %v514 = vmul.f32 %v484, 1.442695
  %v515 = vpow.pop %v514
  %v516 = vmul.f32 %v485, 1.442695
  %v517 = vpow.pop %v516
  %v518 = vadd.f32 %v487, 1.0
  %v519 = vadd.f32 %v489, 1.0
  %v520 = vadd.f32 %v491, 1.0
  %v521 = vadd.f32 %v493, 1.0
  %v522 = vadd.f32 %v495, 1.0
  %v523 = vadd.f32 %v497, 1.0
  %v524 = vadd.f32 %v499, 1.0
  %v525 = vadd.f32 %v501, 1.0
  %v526 = vadd.f32 %v503, 1.0
  %v527 = vadd.f32 %v505, 1.0
  %v528 = vadd.f32 %v507, 1.0
  %v529 = vadd.f32 %v509, 1.0
  %v530 = vadd.f32 %v511, 1.0
  %v531 = vadd.f32 %v513, 1.0
  %v532 = vadd.f32 %v515, 1.0
  %v533 = vadd.f32 %v517, 1.0
  %v534 = vrcp.pop %v518
  %v535 = vmul.f32 1.0, %v534
  %v536 = vrcp.pop %v519
  %v537 = vmul.f32 1.0, %v536
  %v538 = vrcp.pop %v520
  %v539 = vmul.f32 1.0, %v538
  %v540 = vrcp.pop %v521
  %v541 = vmul.f32 1.0, %v540
  %v542 = vrcp.pop %v522
  %v543 = vmul.f32 1.0, %v542
  %v544 = vrcp.pop %v523
  %v545 = vmul.f32 1.0, %v544
  %v546 = vrcp.pop %v524
  %v547 = vmul.f32 1.0, %v546
  %v548 = vrcp.pop %v525
  %v549 = vmul.f32 1.0, %v548
  %v550 = vrcp.pop %v526
  %v551 = vmul.f32 1.0, %v550
  %v552 = vrcp.pop %v527
  %v553 = vmul.f32 1.0, %v552
  %v554 = vrcp.pop %v528
  %v555 = vmul.f32 1.0, %v554
  %v556 = vrcp.pop %v529
  %v557 = vmul.f32 1.0, %v556
  %v558 = vrcp.pop %v530
  %v559 = vmul.f32 1.0, %v558
  %v560 = vrcp.pop %v531
  %v561 = vmul.f32 1.0, %v560
  %v562 = vrcp.pop %v532
  %v563 = vmul.f32 1.0, %v562
  %v564 = vrcp.pop %v533
  %v565 = vmul.f32 1.0, %v564
  %vm566 = vcmask 7168
  %567 = vst.msk [vmem:[%s7] sm:$0xff] %vm566, %v535
  %568 = vst.msk [vmem:[%s7 + $0x8] sm:$0xff] %vm566, %v537
  %569 = vst.msk [vmem:[%s7 + $0x10] sm:$0xff] %vm566, %v539
  %570 = vst.msk [vmem:[%s7 + $0x18] sm:$0xff] %vm566, %v541
  %571 = vst.msk [vmem:[%s7 + $0x20] sm:$0xff] %vm566, %v543
  %572 = vst.msk [vmem:[%s7 + $0x28] sm:$0xff] %vm566, %v545
  %573 = vst.msk [vmem:[%s7 + $0x30] sm:$0xff] %vm566, %v547
  %574 = vst.msk [vmem:[%s7 + $0x38] sm:$0xff] %vm566, %v549
  %575 = vst.msk [vmem:[%s7 + $0x40] sm:$0xff] %vm566, %v551
  %576 = vst.msk [vmem:[%s7 + $0x48] sm:$0xff] %vm566, %v553
  %577 = vst.msk [vmem:[%s7 + $0x50] sm:$0xff] %vm566, %v555
  %578 = vst.msk [vmem:[%s7 + $0x58] sm:$0xff] %vm566, %v557
  %579 = vst.msk [vmem:[%s7 + $0x60] sm:$0xff] %vm566, %v559
  %580 = vst.msk [vmem:[%s7 + $0x68] sm:$0xff] %vm566, %v561
  %581 = vst.msk [vmem:[%s7 + $0x70] sm:$0xff] %vm566, %v563
  %582 = vst.msk [vmem:[%s7 + $0x78] sm:$0xff] %vm566, %v565
  // Predicated region
  $region30: #{tpu_custom_call.1} parent=0 // pred_check
    _
  $region31: #{tpu_custom_call.1} parent=0 // pred_check_branch
    %584 = sbr.rel (0) target = $region33
  $region32: #{tpu_custom_call.1} parent=0 // pred_region
    _
  $region33: #{tpu_custom_call.1} parent=0 // pred_fallthru
    _
  // Predicated region
  $region34: #{tpu_custom_call.1} parent=0 // pred_check
    _
  $region35: #{tpu_custom_call.1} parent=0 // pred_check_branch
    %586 = sbr.rel (0) target = $region37
  $region36: #{tpu_custom_call.1} parent=0 // pred_region
    _
  $region37: #{tpu_custom_call.1} parent=0 // pred_fallthru
    _

// kernel: tpu_custom_call.1
$region0: #{tpu_custom_call.1}
  #allocation0 [shape = 'u32[]', space=smem, size = 0x4, offset = 0x4, fixed_abs, tag = 'smem constant byte address 0x4 - core index']
  #allocation1 [shape = 'u32[144,128]{1,0:T(1,128)}', space=vmem, size = 0x12000, scoped, tag = 'internal scratch']
  #allocation2 [shape = 'f32[1,1]{1,0:T(1,128)S(6)}', space=smem, size = 0x200, scoped, tag = 'scoped memory for tpu_custom_call.1']
  %s0 = inlined_call_operand.vmem [shape: f32[128,16], index: 0, kind: input, shape index: {}]
  %s1 = inlined_call_operand.vmem [shape: bf16[16,128], index: 1, kind: input, shape index: {}]
  %s2 = inlined_call_operand.vmem [shape: f32[1,128], index: 2, kind: input, shape index: {}]
  %s3 = inlined_call_operand.vmem [shape: bf16[1,128,128], index: 3, kind: input, shape index: {}]
  %s4 = inlined_call_operand.vmem [shape: f32[1,1,128], index: 4, kind: input, shape index: {}]
  %s5 = inlined_call_operand.vmem [shape: f32[1,128], index: 5, kind: input, shape index: {}]
  %s6 = inlined_call_operand.<no memory space> [shape: f32[1,1], index: 6, kind: input, shape index: {}]
  %s7 = inlined_call_operand.vmem [shape: f32[128,1], index: 7, kind: output, shape index: {}]
  %s8 = sld [smem:[#allocation0]]
  $region38: #{tpu_custom_call.1} parent=0
    _
  %s10 = ssub.s32 1, %s8
  %s11 = scalar_select 0, %s10, %s8
  %12 = sst [smem:[#allocation2]] %s6
  // Predicated region
  $region2: #{tpu_custom_call.1} parent=0 // pred_check
    _
  $region3: #{tpu_custom_call.1} parent=0 // pred_check_branch
    %14 = sbr.rel (0) target = $region5
  $region4: #{tpu_custom_call.1} parent=0 // pred_region
    _
  $region5: #{tpu_custom_call.1} parent=0 // pred_fallthru
    _
  // Predicated region
  $region6: #{tpu_custom_call.1} parent=0 // pred_check
    _
  $region7: #{tpu_custom_call.1} parent=0 // pred_check_branch
    %16 = sbr.rel (0) target = $region9
  $region8: #{tpu_custom_call.1} parent=0 // pred_region
    _
  $region9: #{tpu_custom_call.1} parent=0 // pred_fallthru
    _
  // Predicated region
  $region10: #{tpu_custom_call.1} parent=0 // pred_check
    _
  $region11: #{tpu_custom_call.1} parent=0 // pred_check_branch
    %18 = sbr.rel (0) target = $region13
  $region12: #{tpu_custom_call.1} parent=0 // pred_region
    _
  $region13: #{tpu_custom_call.1} parent=0 // pred_fallthru
    _
  // Predicated region
  $region14: #{tpu_custom_call.1} parent=0 // pred_check
    _
  $region15: #{tpu_custom_call.1} parent=0 // pred_check_branch
    %20 = sbr.rel (0) target = $region17
  $region16: #{tpu_custom_call.1} parent=0 // pred_region
    _
  $region17: #{tpu_custom_call.1} parent=0 // pred_fallthru
    _
  // Predicated region
  $region18: #{tpu_custom_call.1} parent=0 // pred_check
    _
  $region19: #{tpu_custom_call.1} parent=0 // pred_check_branch
    %22 = sbr.rel (0) target = $region21
  $region20: #{tpu_custom_call.1} parent=0 // pred_region
    _
  $region21: #{tpu_custom_call.1} parent=0 // pred_fallthru
    _
  // Predicated region
  $region22: #{tpu_custom_call.1} parent=0 // pred_check
    _
  $region23: #{tpu_custom_call.1} parent=0 // pred_check_branch
    %24 = sbr.rel (0) target = $region25
  $region24: #{tpu_custom_call.1} parent=0 // pred_region
    _
  $region25: #{tpu_custom_call.1} parent=0 // pred_fallthru
    _
  // Predicated region
  $region26: #{tpu_custom_call.1} parent=0 // pred_check
    _
  $region27: #{tpu_custom_call.1} parent=0 // pred_check_branch
    %26 = sbr.rel (0) target = $region29
  $region28: #{tpu_custom_call.1} parent=0 // pred_region
    _
  $region29: #{tpu_custom_call.1} parent=0 // pred_fallthru
    _
  %v28 = vld [vmem:[%s0] sm:$0xff]
  %v29 = vld [vmem:[%s0 + $0x8] sm:$0xff]
  %v30 = vld [vmem:[%s0 + $0x10] sm:$0xff]
  %v31 = vld [vmem:[%s0 + $0x18] sm:$0xff]
  %v32 = vld [vmem:[%s0 + $0x20] sm:$0xff]
  %v33 = vld [vmem:[%s0 + $0x28] sm:$0xff]
  %v34 = vld [vmem:[%s0 + $0x30] sm:$0xff]
  %v35 = vld [vmem:[%s0 + $0x38] sm:$0xff]
  %v36 = vld [vmem:[%s0 + $0x40] sm:$0xff]
  %v37 = vld [vmem:[%s0 + $0x48] sm:$0xff]
  %v38 = vld [vmem:[%s0 + $0x50] sm:$0xff]
  %v39 = vld [vmem:[%s0 + $0x58] sm:$0xff]
  %v40 = vld [vmem:[%s0 + $0x60] sm:$0xff]
  %v41 = vld [vmem:[%s0 + $0x68] sm:$0xff]
  %v42 = vld [vmem:[%s0 + $0x70] sm:$0xff]
  %v43 = vld [vmem:[%s0 + $0x78] sm:$0xff]
  %v44 = vpack.c.bf16 %v29, %v28
  %v45 = vpack.c.bf16 %v31, %v30
  %v46 = vpack.c.bf16 %v33, %v32
  %v47 = vpack.c.bf16 %v35, %v34
  %v48 = vpack.c.bf16 %v37, %v36
  %v49 = vpack.c.bf16 %v39, %v38
  %v50 = vpack.c.bf16 %v41, %v40
  %v51 = vpack.c.bf16 %v43, %v42
  %v52 = vld [vmem:[%s1] sm:$0xf]
  %v53 = vld [vmem:[%s1 + $0x4] sm:$0xf]
  %v54 = vld [vmem:[%s2] sm:$0x1]
  %v56 = vlaneseq
  %v57 = vshrl.u32 %v56, 7
  %v58 = vsub.s32 0, %v57
  %v59 = vrot.slane %v54, %v58
  %v63 = vunpack.c.l.b16 %v52
  %v64 = vunpack.c.l.b16 %v53
  %v65 = vpack.c.b16 %v64, %v63
  %vm67 = vcmask 130048
  %v69 = vsel %vm67, %v44, 0
  %v72 = vsel %vm67, %v45, 0
  %v75 = vsel %vm67, %v46, 0
  %v78 = vsel %vm67, %v47, 0
  %v81 = vsel %vm67, %v48, 0
  %v84 = vsel %vm67, %v49, 0
  %v87 = vsel %vm67, %v50, 0
  %v90 = vsel %vm67, %v51, 0
  %92 = vmatprep.subr.bf16.mxu0 0
  %93 = vmatpush1.bf16.msra.mxu0 0
  %94 = vmatprep.subr.bf16.mxu0 0
  %95 = vmatpush1.bf16.msra.mxu0 0
  %96 = vmatprep.subr.bf16.mxu0 0
  %97 = vmatpush1.bf16.msra.mxu0 0
  %98 = vmatprep.subr.bf16.mxu0 0
  %99 = vmatpush1.bf16.msra.mxu0 0
  %100 = vmatprep.subr.bf16.mxu0 0
  %101 = vmatpush1.bf16.msra.mxu0 0
  %102 = vmatprep.subr.bf16.mxu0 0
  %103 = vmatpush1.bf16.msra.mxu0 0
  %104 = vmatprep.subr.bf16.mxu0 0
  %105 = vmatpush1.bf16.msra.mxu0 0
  %106 = vmatprep.subr.bf16.mxu0 0
  %107 = vmatpush1.bf16.msra.mxu0 %v65
  %108 = vmatprep.subr.bf16.mxu0 0
  %109 = vmatpush2.bf16.msra.mxu0 0
  %110 = vmatprep.subr.bf16.mxu0 0
  %111 = vmatpush2.bf16.msra.mxu0 0
  %112 = vmatprep.subr.bf16.mxu0 0
  %113 = vmatpush2.bf16.msra.mxu0 0
  %114 = vmatprep.subr.bf16.mxu0 0
  %115 = vmatpush2.bf16.msra.mxu0 0
  %116 = vmatprep.subr.bf16.mxu0 0
  %117 = vmatpush2.bf16.msra.mxu0 0
  %118 = vmatprep.subr.bf16.mxu0 0
  %119 = vmatpush2.bf16.msra.mxu0 0
  %120 = vmatprep.subr.bf16.mxu0 0
  %121 = vmatpush2.bf16.msra.mxu0 0
  %122 = vmatprep.subr.bf16.mxu0 0
  %123 = vmatpush2.bf16.msra.mxu0 0
  %124 = vmatprep.mubr.bf16.mxu0 0
  %125 = vmatmul.mubr.bf16.gmra.mxu0 %v69
  %v126 = vpop.f32.mrf.mxu0
  %v127 = vadd.f32 %v59, %v126
  %v128 = vpop.f32.mrf.mxu0
  %v129 = vpop.f32.mrf.mxu0
  %v130 = vadd.f32 %v59, %v129
  %v131 = vpop.f32.mrf.mxu0
  %132 = vmatprep.mubr.bf16.mxu0 0
  %133 = vmatmul.mubr.bf16.gmra.mxu0 %v72
  %v134 = vpop.f32.mrf.mxu0
  %v135 = vadd.f32 %v59, %v134
  %v136 = vpop.f32.mrf.mxu0
  %v137 = vpop.f32.mrf.mxu0
  %v138 = vadd.f32 %v59, %v137
  %v139 = vpop.f32.mrf.mxu0
  %140 = vmatprep.mubr.bf16.mxu0 0
  %141 = vmatmul.mubr.bf16.gmra.mxu0 %v75
  %v142 = vpop.f32.mrf.mxu0
  %v143 = vadd.f32 %v59, %v142
  %v144 = vpop.f32.mrf.mxu0
  %v145 = vpop.f32.mrf.mxu0
  %v146 = vadd.f32 %v59, %v145
  %v147 = vpop.f32.mrf.mxu0
  %148 = vmatprep.mubr.bf16.mxu0 0
  %149 = vmatmul.mubr.bf16.gmra.mxu0 %v78
  %v150 = vpop.f32.mrf.mxu0
  %v151 = vadd.f32 %v59, %v150
  %v152 = vpop.f32.mrf.mxu0
  %v153 = vpop.f32.mrf.mxu0
  %v154 = vadd.f32 %v59, %v153
  %v155 = vpop.f32.mrf.mxu0
  %156 = vmatprep.mubr.bf16.mxu0 0
  %157 = vmatmul.mubr.bf16.gmra.mxu0 %v81
  %v158 = vpop.f32.mrf.mxu0
  %v159 = vadd.f32 %v59, %v158
  %v160 = vpop.f32.mrf.mxu0
  %v161 = vpop.f32.mrf.mxu0
  %v162 = vadd.f32 %v59, %v161
  %v163 = vpop.f32.mrf.mxu0
  %164 = vmatprep.mubr.bf16.mxu0 0
  %165 = vmatmul.mubr.bf16.gmra.mxu0 %v84
  %v166 = vpop.f32.mrf.mxu0
  %v167 = vadd.f32 %v59, %v166
  %v168 = vpop.f32.mrf.mxu0
  %v169 = vpop.f32.mrf.mxu0
  %v170 = vadd.f32 %v59, %v169
  %v171 = vpop.f32.mrf.mxu0
  %172 = vmatprep.mubr.bf16.mxu0 0
  %173 = vmatmul.mubr.bf16.gmra.mxu0 %v87
  %v174 = vpop.f32.mrf.mxu0
  %v175 = vadd.f32 %v59, %v174
  %v176 = vpop.f32.mrf.mxu0
  %v177 = vpop.f32.mrf.mxu0
  %v178 = vadd.f32 %v59, %v177
  %v179 = vpop.f32.mrf.mxu0
  %180 = vmatprep.mubr.bf16.mxu0 0
  %181 = vmatmul.mubr.bf16.gmra.mxu0 %v90
  %v182 = vpop.f32.mrf.mxu0
  %v183 = vadd.f32 %v59, %v182
  %v184 = vpop.f32.mrf.mxu0
  %v185 = vpop.f32.mrf.mxu0
  %v186 = vadd.f32 %v59, %v185
  %v187 = vpop.f32.mrf.mxu0
  %188 = vdwg.mxu0
  %v189 = vmax.f32 %v127, 0.0
  %v190 = vmax.f32 %v130, 0.0
  %v191 = vmax.f32 %v135, 0.0
  %v192 = vmax.f32 %v138, 0.0
  %v193 = vmax.f32 %v143, 0.0
  %v194 = vmax.f32 %v146, 0.0
  %v195 = vmax.f32 %v151, 0.0
  %v196 = vmax.f32 %v154, 0.0
  %v197 = vmax.f32 %v159, 0.0
  %v198 = vmax.f32 %v162, 0.0
  %v199 = vmax.f32 %v167, 0.0
  %v200 = vmax.f32 %v170, 0.0
  %v201 = vmax.f32 %v175, 0.0
  %v202 = vmax.f32 %v178, 0.0
  %v203 = vmax.f32 %v183, 0.0
  %v204 = vmax.f32 %v186, 0.0
  %v205 = vpack.c.bf16 %v190, %v189
  %v206 = vpack.c.bf16 %v192, %v191
  %v207 = vpack.c.bf16 %v194, %v193
  %v208 = vpack.c.bf16 %v196, %v195
  %v209 = vpack.c.bf16 %v198, %v197
  %v210 = vpack.c.bf16 %v200, %v199
  %v211 = vpack.c.bf16 %v202, %v201
  %v212 = vpack.c.bf16 %v204, %v203
  %v213 = vld [vmem:[%s3] sm:$0xf]
  %v214 = vld [vmem:[%s3 + $0x4] sm:$0xf]
  %v215 = vld [vmem:[%s3 + $0x8] sm:$0xf]
  %v216 = vld [vmem:[%s3 + $0xc] sm:$0xf]
  %v217 = vld [vmem:[%s3 + $0x10] sm:$0xf]
  %v218 = vld [vmem:[%s3 + $0x14] sm:$0xf]
  %v219 = vld [vmem:[%s3 + $0x18] sm:$0xf]
  %v220 = vld [vmem:[%s3 + $0x1c] sm:$0xf]
  %v221 = vld [vmem:[%s3 + $0x20] sm:$0xf]
  %v222 = vld [vmem:[%s3 + $0x24] sm:$0xf]
  %v223 = vld [vmem:[%s3 + $0x28] sm:$0xf]
  %v224 = vld [vmem:[%s3 + $0x2c] sm:$0xf]
  %v225 = vld [vmem:[%s3 + $0x30] sm:$0xf]
  %v226 = vld [vmem:[%s3 + $0x34] sm:$0xf]
  %v227 = vld [vmem:[%s3 + $0x38] sm:$0xf]
  %v228 = vld [vmem:[%s3 + $0x3c] sm:$0xf]
  %v229 = vld [vmem:[%s4] sm:$0x1]
  %v231 = vlaneseq
  %v232 = vshrl.u32 %v231, 7
  %v233 = vsub.s32 0, %v232
  %v234 = vrot.slane %v229, %v233
  %v252 = vunpack.c.l.b16 %v213
  %v253 = vunpack.c.l.b16 %v214
  %v254 = vunpack.c.l.b16 %v215
  %v255 = vunpack.c.l.b16 %v216
  %v256 = vunpack.c.l.b16 %v217
  %v257 = vunpack.c.l.b16 %v218
  %v258 = vunpack.c.l.b16 %v219
  %v259 = vunpack.c.l.b16 %v220
  %v260 = vunpack.c.l.b16 %v221
  %v261 = vunpack.c.l.b16 %v222
  %v262 = vunpack.c.l.b16 %v223
  %v263 = vunpack.c.l.b16 %v224
  %v264 = vunpack.c.l.b16 %v225
  %v265 = vunpack.c.l.b16 %v226
  %v266 = vunpack.c.l.b16 %v227
  %v267 = vunpack.c.l.b16 %v228
  %v268 = vpack.c.b16 %v253, %v252
  %v269 = vpack.c.b16 %v255, %v254
  %v270 = vpack.c.b16 %v257, %v256
  %v271 = vpack.c.b16 %v259, %v258
  %v272 = vpack.c.b16 %v261, %v260
  %v273 = vpack.c.b16 %v263, %v262
  %v274 = vpack.c.b16 %v265, %v264
  %v275 = vpack.c.b16 %v267, %v266
  %284 = vmatprep.subr.bf16.mxu0 0
  %285 = vmatpush1.bf16.msra.mxu0 %v275
  %286 = vmatprep.subr.bf16.mxu0 0
  %287 = vmatpush1.bf16.msra.mxu0 %v274
  %288 = vmatprep.subr.bf16.mxu0 0
  %289 = vmatpush1.bf16.msra.mxu0 %v273
  %290 = vmatprep.subr.bf16.mxu0 0
  %291 = vmatpush1.bf16.msra.mxu0 %v272
  %292 = vmatprep.subr.bf16.mxu0 0
  %293 = vmatpush1.bf16.msra.mxu0 %v271
  %294 = vmatprep.subr.bf16.mxu0 0
  %295 = vmatpush1.bf16.msra.mxu0 %v270
  %296 = vmatprep.subr.bf16.mxu0 0
  %297 = vmatpush1.bf16.msra.mxu0 %v269
  %298 = vmatprep.subr.bf16.mxu0 0
  %299 = vmatpush1.bf16.msra.mxu0 %v268
  %300 = vmatprep.subr.bf16.mxu0 0
  %301 = vmatpush2.bf16.msra.mxu0 0
  %302 = vmatprep.subr.bf16.mxu0 0
  %303 = vmatpush2.bf16.msra.mxu0 0
  %304 = vmatprep.subr.bf16.mxu0 0
  %305 = vmatpush2.bf16.msra.mxu0 0
  %306 = vmatprep.subr.bf16.mxu0 0
  %307 = vmatpush2.bf16.msra.mxu0 0
  %308 = vmatprep.subr.bf16.mxu0 0
  %309 = vmatpush2.bf16.msra.mxu0 0
  %310 = vmatprep.subr.bf16.mxu0 0
  %311 = vmatpush2.bf16.msra.mxu0 0
  %312 = vmatprep.subr.bf16.mxu0 0
  %313 = vmatpush2.bf16.msra.mxu0 0
  %314 = vmatprep.subr.bf16.mxu0 0
  %315 = vmatpush2.bf16.msra.mxu0 0
  %316 = vmatprep.mubr.bf16.mxu0 0
  %317 = vmatmul.mubr.bf16.gmra.mxu0 %v205
  %v318 = vpop.f32.mrf.mxu0
  %v319 = vadd.f32 %v234, %v318
  %v320 = vpop.f32.mrf.mxu0
  %v321 = vpop.f32.mrf.mxu0
  %v322 = vadd.f32 %v234, %v321
  %v323 = vpop.f32.mrf.mxu0
  %324 = vmatprep.mubr.bf16.mxu0 0
  %325 = vmatmul.mubr.bf16.gmra.mxu0 %v206
  %v326 = vpop.f32.mrf.mxu0
  %v327 = vadd.f32 %v234, %v326
  %v328 = vpop.f32.mrf.mxu0
  %v329 = vpop.f32.mrf.mxu0
  %v330 = vadd.f32 %v234, %v329
  %v331 = vpop.f32.mrf.mxu0
  %332 = vmatprep.mubr.bf16.mxu0 0
  %333 = vmatmul.mubr.bf16.gmra.mxu0 %v207
  %v334 = vpop.f32.mrf.mxu0
  %v335 = vadd.f32 %v234, %v334
  %v336 = vpop.f32.mrf.mxu0
  %v337 = vpop.f32.mrf.mxu0
  %v338 = vadd.f32 %v234, %v337
  %v339 = vpop.f32.mrf.mxu0
  %340 = vmatprep.mubr.bf16.mxu0 0
  %341 = vmatmul.mubr.bf16.gmra.mxu0 %v208
  %v342 = vpop.f32.mrf.mxu0
  %v343 = vadd.f32 %v234, %v342
  %v344 = vpop.f32.mrf.mxu0
  %v345 = vpop.f32.mrf.mxu0
  %v346 = vadd.f32 %v234, %v345
  %v347 = vpop.f32.mrf.mxu0
  %348 = vmatprep.mubr.bf16.mxu0 0
  %349 = vmatmul.mubr.bf16.gmra.mxu0 %v209
  %v350 = vpop.f32.mrf.mxu0
  %v351 = vadd.f32 %v234, %v350
  %v352 = vpop.f32.mrf.mxu0
  %v353 = vpop.f32.mrf.mxu0
  %v354 = vadd.f32 %v234, %v353
  %v355 = vpop.f32.mrf.mxu0
  %356 = vmatprep.mubr.bf16.mxu0 0
  %357 = vmatmul.mubr.bf16.gmra.mxu0 %v210
  %v358 = vpop.f32.mrf.mxu0
  %v359 = vadd.f32 %v234, %v358
  %v360 = vpop.f32.mrf.mxu0
  %v361 = vpop.f32.mrf.mxu0
  %v362 = vadd.f32 %v234, %v361
  %v363 = vpop.f32.mrf.mxu0
  %364 = vmatprep.mubr.bf16.mxu0 0
  %365 = vmatmul.mubr.bf16.gmra.mxu0 %v211
  %v366 = vpop.f32.mrf.mxu0
  %v367 = vadd.f32 %v234, %v366
  %v368 = vpop.f32.mrf.mxu0
  %v369 = vpop.f32.mrf.mxu0
  %v370 = vadd.f32 %v234, %v369
  %v371 = vpop.f32.mrf.mxu0
  %372 = vmatprep.mubr.bf16.mxu0 0
  %373 = vmatmul.mubr.bf16.gmra.mxu0 %v212
  %v374 = vpop.f32.mrf.mxu0
  %v375 = vadd.f32 %v234, %v374
  %v376 = vpop.f32.mrf.mxu0
  %v377 = vpop.f32.mrf.mxu0
  %v378 = vadd.f32 %v234, %v377
  %v379 = vpop.f32.mrf.mxu0
  %380 = vdwg.mxu0
  %v381 = vmax.f32 %v319, 0.0
  %v382 = vmax.f32 %v322, 0.0
  %v383 = vmax.f32 %v327, 0.0
  %v384 = vmax.f32 %v330, 0.0
  %v385 = vmax.f32 %v335, 0.0
  %v386 = vmax.f32 %v338, 0.0
  %v387 = vmax.f32 %v343, 0.0
  %v388 = vmax.f32 %v346, 0.0
  %v389 = vmax.f32 %v351, 0.0
  %v390 = vmax.f32 %v354, 0.0
  %v391 = vmax.f32 %v359, 0.0
  %v392 = vmax.f32 %v362, 0.0
  %v393 = vmax.f32 %v367, 0.0
  %v394 = vmax.f32 %v370, 0.0
  %v395 = vmax.f32 %v375, 0.0
  %v396 = vmax.f32 %v378, 0.0
  %v397 = vld [vmem:[%s5] sm:$0x1]
  %v399 = vlaneseq
  %v400 = vshrl.u32 %v399, 7
  %v401 = vsub.s32 0, %v400
  %v402 = vrot.slane %v397, %v401
  %v404 = vmul.f32 %v381, %v402
  %v405 = vmul.f32 %v382, %v402
  %v406 = vmul.f32 %v383, %v402
  %v407 = vmul.f32 %v384, %v402
  %v408 = vmul.f32 %v385, %v402
  %v409 = vmul.f32 %v386, %v402
  %v410 = vmul.f32 %v387, %v402
  %v411 = vmul.f32 %v388, %v402
  %v412 = vmul.f32 %v389, %v402
  %v413 = vmul.f32 %v390, %v402
  %v414 = vmul.f32 %v391, %v402
  %v415 = vmul.f32 %v392, %v402
  %v416 = vmul.f32 %v393, %v402
  %v417 = vmul.f32 %v394, %v402
  %v418 = vmul.f32 %v395, %v402
  %v419 = vmul.f32 %v396, %v402
  %420 = vadd.xlane.f32.xlu0 %v404
  %v421 = vpop.xlane.xlu0 %420
  %422 = vadd.xlane.f32.xlu0 %v405
  %v423 = vpop.xlane.xlu0 %422
  %424 = vadd.xlane.f32.xlu0 %v406
  %v425 = vpop.xlane.xlu0 %424
  %426 = vadd.xlane.f32.xlu0 %v407
  %v427 = vpop.xlane.xlu0 %426
  %428 = vadd.xlane.f32.xlu0 %v408
  %v429 = vpop.xlane.xlu0 %428
  %430 = vadd.xlane.f32.xlu0 %v409
  %v431 = vpop.xlane.xlu0 %430
  %432 = vadd.xlane.f32.xlu0 %v410
  %v433 = vpop.xlane.xlu0 %432
  %434 = vadd.xlane.f32.xlu0 %v411
  %v435 = vpop.xlane.xlu0 %434
  %436 = vadd.xlane.f32.xlu0 %v412
  %v437 = vpop.xlane.xlu0 %436
  %438 = vadd.xlane.f32.xlu0 %v413
  %v439 = vpop.xlane.xlu0 %438
  %440 = vadd.xlane.f32.xlu0 %v414
  %v441 = vpop.xlane.xlu0 %440
  %442 = vadd.xlane.f32.xlu0 %v415
  %v443 = vpop.xlane.xlu0 %442
  %444 = vadd.xlane.f32.xlu0 %v416
  %v445 = vpop.xlane.xlu0 %444
  %446 = vadd.xlane.f32.xlu0 %v417
  %v447 = vpop.xlane.xlu0 %446
  %448 = vadd.xlane.f32.xlu0 %v418
  %v449 = vpop.xlane.xlu0 %448
  %450 = vadd.xlane.f32.xlu0 %v419
  %v451 = vpop.xlane.xlu0 %450
  %s452 = sld [smem:[#allocation2]]
  %v453 = vstv %s452
  %v454 = vadd.f32 %v421, %v453
  %v455 = vadd.f32 %v423, %v453
  %v456 = vadd.f32 %v425, %v453
  %v457 = vadd.f32 %v427, %v453
  %v458 = vadd.f32 %v429, %v453
  %v459 = vadd.f32 %v431, %v453
  %v460 = vadd.f32 %v433, %v453
  %v461 = vadd.f32 %v435, %v453
  %v462 = vadd.f32 %v437, %v453
  %v463 = vadd.f32 %v439, %v453
  %v464 = vadd.f32 %v441, %v453
  %v465 = vadd.f32 %v443, %v453
  %v466 = vadd.f32 %v445, %v453
  %v467 = vadd.f32 %v447, %v453
  %v468 = vadd.f32 %v449, %v453
  %v469 = vadd.f32 %v451, %v453
  %v470 = vxor.u32 %v454, 2147483648
  %v471 = vxor.u32 %v455, 2147483648
  %v472 = vxor.u32 %v456, 2147483648
  %v473 = vxor.u32 %v457, 2147483648
  %v474 = vxor.u32 %v458, 2147483648
  %v475 = vxor.u32 %v459, 2147483648
  %v476 = vxor.u32 %v460, 2147483648
  %v477 = vxor.u32 %v461, 2147483648
  %v478 = vxor.u32 %v462, 2147483648
  %v479 = vxor.u32 %v463, 2147483648
  %v480 = vxor.u32 %v464, 2147483648
  %v481 = vxor.u32 %v465, 2147483648
  %v482 = vxor.u32 %v466, 2147483648
  %v483 = vxor.u32 %v467, 2147483648
  %v484 = vxor.u32 %v468, 2147483648
  %v485 = vxor.u32 %v469, 2147483648
  %v486 = vmul.f32 %v470, 1.442695
  %v487 = vpow.pop %v486
  %v488 = vmul.f32 %v471, 1.442695
  %v489 = vpow.pop %v488
  %v490 = vmul.f32 %v472, 1.442695
  %v491 = vpow.pop %v490
  %v492 = vmul.f32 %v473, 1.442695
  %v493 = vpow.pop %v492
  %v494 = vmul.f32 %v474, 1.442695
  %v495 = vpow.pop %v494
  %v496 = vmul.f32 %v475, 1.442695
  %v497 = vpow.pop %v496
  %v498 = vmul.f32 %v476, 1.442695
  %v499 = vpow.pop %v498
  %v500 = vmul.f32 %v477, 1.442695
  %v501 = vpow.pop %v500
  %v502 = vmul.f32 %v478, 1.442695
  %v503 = vpow.pop %v502
  %v504 = vmul.f32 %v479, 1.442695
  %v505 = vpow.pop %v504
  %v506 = vmul.f32 %v480, 1.442695
  %v507 = vpow.pop %v506
  %v508 = vmul.f32 %v481, 1.442695
  %v509 = vpow.pop %v508
  %v510 = vmul.f32 %v482, 1.442695
  %v511 = vpow.pop %v510
  %v512 = vmul.f32 %v483, 1.442695
  %v513 = vpow.pop %v512
  %v514 = vmul.f32 %v484, 1.442695
  %v515 = vpow.pop %v514
  %v516 = vmul.f32 %v485, 1.442695
  %v517 = vpow.pop %v516
  %v518 = vadd.f32 %v487, 1.0
  %v519 = vadd.f32 %v489, 1.0
  %v520 = vadd.f32 %v491, 1.0
  %v521 = vadd.f32 %v493, 1.0
  %v522 = vadd.f32 %v495, 1.0
  %v523 = vadd.f32 %v497, 1.0
  %v524 = vadd.f32 %v499, 1.0
  %v525 = vadd.f32 %v501, 1.0
  %v526 = vadd.f32 %v503, 1.0
  %v527 = vadd.f32 %v505, 1.0
  %v528 = vadd.f32 %v507, 1.0
  %v529 = vadd.f32 %v509, 1.0
  %v530 = vadd.f32 %v511, 1.0
  %v531 = vadd.f32 %v513, 1.0
  %v532 = vadd.f32 %v515, 1.0
  %v533 = vadd.f32 %v517, 1.0
  %v534 = vrcp.pop %v518
  %v535 = vmul.f32 1.0, %v534
  %v536 = vrcp.pop %v519
  %v537 = vmul.f32 1.0, %v536
  %v538 = vrcp.pop %v520
  %v539 = vmul.f32 1.0, %v538
  %v540 = vrcp.pop %v521
  %v541 = vmul.f32 1.0, %v540
  %v542 = vrcp.pop %v522
  %v543 = vmul.f32 1.0, %v542
  %v544 = vrcp.pop %v523
  %v545 = vmul.f32 1.0, %v544
  %v546 = vrcp.pop %v524
  %v547 = vmul.f32 1.0, %v546
  %v548 = vrcp.pop %v525
  %v549 = vmul.f32 1.0, %v548
  %v550 = vrcp.pop %v526
  %v551 = vmul.f32 1.0, %v550
  %v552 = vrcp.pop %v527
  %v553 = vmul.f32 1.0, %v552
  %v554 = vrcp.pop %v528
  %v555 = vmul.f32 1.0, %v554
  %v556 = vrcp.pop %v529
  %v557 = vmul.f32 1.0, %v556
  %v558 = vrcp.pop %v530
  %v559 = vmul.f32 1.0, %v558
  %v560 = vrcp.pop %v531
  %v561 = vmul.f32 1.0, %v560
  %v562 = vrcp.pop %v532
  %v563 = vmul.f32 1.0, %v562
  %v564 = vrcp.pop %v533
  %v565 = vmul.f32 1.0, %v564
  %vm566 = vcmask 7168
  %567 = vst.msk [vmem:[%s7] sm:$0xff] %vm566, %v535
  %568 = vst.msk [vmem:[%s7 + $0x8] sm:$0xff] %vm566, %v537
  %569 = vst.msk [vmem:[%s7 + $0x10] sm:$0xff] %vm566, %v539
  %570 = vst.msk [vmem:[%s7 + $0x18] sm:$0xff] %vm566, %v541
  %571 = vst.msk [vmem:[%s7 + $0x20] sm:$0xff] %vm566, %v543
  %572 = vst.msk [vmem:[%s7 + $0x28] sm:$0xff] %vm566, %v545
  %573 = vst.msk [vmem:[%s7 + $0x30] sm:$0xff] %vm566, %v547
  %574 = vst.msk [vmem:[%s7 + $0x38] sm:$0xff] %vm566, %v549
  %575 = vst.msk [vmem:[%s7 + $0x40] sm:$0xff] %vm566, %v551
  %576 = vst.msk [vmem:[%s7 + $0x48] sm:$0xff] %vm566, %v553
  %577 = vst.msk [vmem:[%s7 + $0x50] sm:$0xff] %vm566, %v555
  %578 = vst.msk [vmem:[%s7 + $0x58] sm:$0xff] %vm566, %v557
  %579 = vst.msk [vmem:[%s7 + $0x60] sm:$0xff] %vm566, %v559
  %580 = vst.msk [vmem:[%s7 + $0x68] sm:$0xff] %vm566, %v561
  %581 = vst.msk [vmem:[%s7 + $0x70] sm:$0xff] %vm566, %v563
  %582 = vst.msk [vmem:[%s7 + $0x78] sm:$0xff] %vm566, %v565
  // Predicated region
  $region30: #{tpu_custom_call.1} parent=0 // pred_check
    _
  $region31: #{tpu_custom_call.1} parent=0 // pred_check_branch
    %584 = sbr.rel (0) target = $region33
  $region32: #{tpu_custom_call.1} parent=0 // pred_region
    _
  $region33: #{tpu_custom_call.1} parent=0 // pred_fallthru
    _
  // Predicated region
  $region34: #{tpu_custom_call.1} parent=0 // pred_check
    _
  $region35: #{tpu_custom_call.1} parent=0 // pred_check_branch
    %586 = sbr.rel (0) target = $region37
  $region36: #{tpu_custom_call.1} parent=0 // pred_region
    _
  $region37: #{tpu_custom_call.1} parent=0 // pred_fallthru
    _

</llo_original>
